<compile_context>
chip_gen: v7x
topology: tpu7x:2x2x1
jax: 0.10.0
libtpu: 0.0.40
codegen_flags: <defaults>
</compile_context>

<pallas_src>
import functools
import numpy as np

import jax
import jax.numpy as jnp
from jax import lax
from jax.experimental import pallas as pl
from jax.experimental.pallas import tpu as pltpu

START = '<START>'
STOP = '<STOP>'
UNK = '<UNK>'

LANE = 128


def _round_up(x, m):
    return ((x + m - 1) // m) * m


# ----------------------------- small helpers --------------------------------

class Vocab:
    def __init__(self, values, counts=None):
        self.values_list = list(values)
        self._index = {v: i for i, v in enumerate(self.values_list)}
        self._counts = dict(counts or {})

    @property
    def size(self):
        return len(self.values_list)

    def index(self, v):
        return self._index[v]

    def value(self, i):
        return self.values_list[i]

    def count(self, v):
        return self._counts.get(v, 0)


class LeafParseNode:
    def __init__(self, index, tag, word):
        self.index, self.tag, self.word = index, tag, word

    def linearize(self):
        return "({} {})".format(self.tag, self.word)


class InternalParseNode:
    def __init__(self, label, children):
        self.label, self.children = label, children

    def linearize(self):
        return "({} {})".format("-".join(self.label),
                                " ".join(c.linearize() for c in self.children))


# ----------------------------- Pallas kernels -------------------------------

def _linear_kernel(x_ref, w_ref, b_ref, o_ref):
    o_ref[...] = (jnp.dot(x_ref[...], w_ref[...],
                          preferred_element_type=jnp.float32) + b_ref[...])


def pallas_linear(x, w, b, row_tile=256):
    """out = x @ w + b.   x:[T,Din]  w:[Din,Dout]  b:[Dout].

    Tiled over T rows so long sequences get DMA/compute overlap; at toy sizes
    this collapses to a single grid step.
    """
    T, Din = x.shape
    Dout = w.shape[1]
    tile = min(row_tile, _round_up(T, 8))
    T_pad = _round_up(T, tile)

    x_p = x.astype(jnp.float32)
    if T_pad != T:
        x_p = jnp.zeros((T_pad, Din), jnp.float32).at[:T].set(x_p)

    rows = lambda i: (i, 0)
    full = lambda i: (0, 0)
    out = pl.pallas_call(
        _linear_kernel,
        out_shape=jax.ShapeDtypeStruct((T_pad, Dout), jnp.float32),
        grid=(T_pad // tile,),
        in_specs=[
            pl.BlockSpec((tile, Din), rows),
            pl.BlockSpec((Din, Dout), full),
            pl.BlockSpec((1, Dout), full),
        ],
        out_specs=pl.BlockSpec((tile, Dout), rows),
        compiler_params=pltpu.CompilerParams(dimension_semantics=("parallel",)),
    )(x_p, w.astype(jnp.float32), b.reshape(1, Dout).astype(jnp.float32))
    return out[:T]


def _span_scores_kernel(x_ref, w1_ref, b1_ref, w2_ref, b2_ref, out_ref):
    # Fused f_label / f_split two-layer MLP on one row tile.
    # Matmul inputs bf16, accumulation + elementwise (bias/ReLU) in f32.
    x = x_ref[...]                                               # bf16 [tile, D2p]
    h = jnp.dot(x, w1_ref[...],
                preferred_element_type=jnp.float32) + b1_ref[...]
    h = jnp.maximum(h, 0.0)                                      # f32 [tile, Hp]
    out_ref[...] = (jnp.dot(h.astype(jnp.bfloat16), w2_ref[...],
                            preferred_element_type=jnp.float32) + b2_ref[...])


def pallas_span_scores(enc, fl_w1, fl_b1, fl_w2, fl_b2,
                       fs_w1, fs_b1, fs_w2, fs_b2, max_tile=512):
    """Fused f_label / f_split over all span encodings enc:[S, 2*lstm_dim].

    Returns (label_scores [S, L], split_scores [S]).
    """
    S, D2 = enc.shape
    Hl = fl_w1.shape[1]
    Hs = fs_w1.shape[1]
    L = fl_w2.shape[1]

    D2p = _round_up(D2, LANE)          # pad contraction dim (zero cols, safe)
    Hp = _round_up(Hl + Hs, LANE)      # pad fused hidden dim (zero cols, safe)
    Op = _round_up(L + 1, LANE)        # lane-dense output: labels | split | zeros

    tile = min(max_tile, _round_up(S, 8))
    S_pad = _round_up(S, tile)

    enc_p = jnp.zeros((S_pad, D2p), jnp.bfloat16)
    enc_p = enc_p.at[:S, :D2].set(enc.astype(jnp.bfloat16))

    # Fused first layer: columns [0, Hl) -> f_label hidden, [Hl, Hl+Hs) -> f_split.
    w1 = jnp.zeros((D2p, Hp), jnp.bfloat16)
    w1 = w1.at[:D2, :Hl].set(fl_w1.astype(jnp.bfloat16))
    w1 = w1.at[:D2, Hl:Hl + Hs].set(fs_w1.astype(jnp.bfloat16))
    b1 = jnp.zeros((1, Hp), jnp.float32)
    b1 = b1.at[0, :Hl].set(fl_b1.astype(jnp.float32))
    b1 = b1.at[0, Hl:Hl + Hs].set(fs_b1.astype(jnp.float32))

    # Fused second layer: block-diagonal.  Cols [0, L) = label scores, col L = split.
    w2 = jnp.zeros((Hp, Op), jnp.bfloat16)
    w2 = w2.at[:Hl, :L].set(fl_w2.astype(jnp.bfloat16))
    w2 = w2.at[Hl:Hl + Hs, L:L + 1].set(fs_w2.astype(jnp.bfloat16))
    b2 = jnp.zeros((1, Op), jnp.float32)
    b2 = b2.at[0, :L].set(fl_b2.astype(jnp.float32))
    b2 = b2.at[0, L].set(fs_b2.astype(jnp.float32)[0])

    rows = lambda i: (i, 0)
    full = lambda i: (0, 0)

    out = pl.pallas_call(
        _span_scores_kernel,
        out_shape=jax.ShapeDtypeStruct((S_pad, Op), jnp.float32),
        grid=(S_pad // tile,),
        in_specs=[
            pl.BlockSpec((tile, D2p), rows),
            pl.BlockSpec((D2p, Hp), full),
            pl.BlockSpec((1, Hp), full),
            pl.BlockSpec((Hp, Op), full),
            pl.BlockSpec((1, Op), full),
        ],
        out_specs=pl.BlockSpec((tile, Op), rows),
        compiler_params=pltpu.CompilerParams(dimension_semantics=("parallel",)),
    )(enc_p, w1, b1, w2, b2)

    label_scores = out[:S, :L]
    split_scores = out[:S, L]
    return label_scores, split_scores


# ----------------------------- BiLSTM (glue + Pallas ih-proj) ----------------

def bilstm_layer(x, layer_params):
    """One bidirectional LSTM layer over x:[T, Din] (batch=1, PyTorch gate order)."""
    w_ih_f, w_hh_f, b_ih_f, b_hh_f = layer_params['fwd']
    w_ih_b, w_hh_b, b_ih_b, b_hh_b = layer_params['bwd']
    H = w_hh_f.shape[1]

    # Fused fwd+bwd input projection: one [T, Din] @ [Din, 8H] Pallas matmul.
    w_cat = jnp.concatenate([w_ih_f.T, w_ih_b.T], axis=1)        # [Din, 8H]
    b_cat = jnp.concatenate([b_ih_f + b_hh_f, b_ih_b + b_hh_b])  # [8H]
    xproj = pallas_linear(x, w_cat, b_cat)                       # [T, 8H]

    xp_f = xproj[:, :4 * H]
    xp_b = xproj[:, 4 * H:][::-1]           # backward pass scans reversed sequence
    xp = jnp.stack([xp_f, xp_b], axis=1)    # [T, 2, 4H]

    # Pre-transpose recurrent weights once (hoisted out of the scan body).
    w_hh_T = jnp.stack([w_hh_f.T, w_hh_b.T], axis=0)             # [2, H, 4H]

    def step(carry, xp_t):
        h, c = carry                                             # each [2, H]
        gates = xp_t + jnp.einsum('bh,bhg->bg', h, w_hh_T)       # [2, 4H]
        i = jax.nn.sigmoid(gates[:, 0 * H:1 * H])
        f = jax.nn.sigmoid(gates[:, 1 * H:2 * H])
        g = jnp.tanh(gates[:, 2 * H:3 * H])
        o = jax.nn.sigmoid(gates[:, 3 * H:4 * H])
        c = f * c + i * g
        h = o * jnp.tanh(c)
        return (h, c), h

    init = (jnp.zeros((2, H), jnp.float32), jnp.zeros((2, H), jnp.float32))
    _, hs = lax.scan(step, init, xp)                             # [T, 2, H]
    fwd = hs[:, 0, :]
    bwd = hs[:, 1, :][::-1]
    return jnp.concatenate([fwd, bwd], axis=-1)                  # [T, 2H]


def bilstm(x, lstm_params):
    out = x
    for layer_params in lstm_params:
        out = bilstm_layer(out, layer_params)
        # nn.LSTM inter-layer dropout is inactive at inference (dropout=0.0 here).
    return out  # [T, 2*lstm_dim]


# ----------------------------- parser ----------------------------------------

class JaxTopDownParser:
    def __init__(self, tag_vocab, word_vocab, label_vocab,
                 tag_embedding_dim, word_embedding_dim,
                 lstm_layers, lstm_dim, label_hidden_dim, split_hidden_dim,
                 dropout, key):
        self.tag_vocab = tag_vocab
        self.word_vocab = word_vocab
        self.label_vocab = label_vocab
        self.lstm_dim = lstm_dim

        def init(k, shape):
            return jax.random.uniform(k, shape, jnp.float32, -0.1, 0.1)

        keys = iter(jax.random.split(key, 64))
        self.tag_embeddings = init(next(keys), (tag_vocab.size, tag_embedding_dim))
        self.word_embeddings = init(next(keys), (word_vocab.size, word_embedding_dim))

        H = lstm_dim
        in_dim = tag_embedding_dim + word_embedding_dim
        self.lstm_params = []
        for layer in range(lstm_layers):
            d = in_dim if layer == 0 else 2 * H
            layer_p = {}
            for dirn in ('fwd', 'bwd'):
                layer_p[dirn] = (init(next(keys), (4 * H, d)),    # w_ih
                                 init(next(keys), (4 * H, H)),    # w_hh
                                 init(next(keys), (4 * H,)),      # b_ih
                                 init(next(keys), (4 * H,)))      # b_hh
            self.lstm_params.append(layer_p)

        D2 = 2 * H
        self.fl_w1 = init(next(keys), (D2, label_hidden_dim))
        self.fl_b1 = init(next(keys), (label_hidden_dim,))
        self.fl_w2 = init(next(keys), (label_hidden_dim, label_vocab.size))
        self.fl_b2 = init(next(keys), (label_vocab.size,))
        self.fs_w1 = init(next(keys), (D2, split_hidden_dim))
        self.fs_b1 = init(next(keys), (split_hidden_dim,))
        self.fs_w2 = init(next(keys), (split_hidden_dim, 1))
        self.fs_b2 = init(next(keys), (1,))

    def forward(self, sentence):
        # Inference path only (gold=None).
        # TODO(synk): training path (oracle labels/splits + `augment`) is not
        # exercised here since it requires a gold tree object.
        n = len(sentence)
        tag_idx, word_idx = [], []
        for tag, word in [(START, START)] + list(sentence) + [(STOP, STOP)]:
            ti = self.tag_vocab.index(tag)
            if word not in (START, STOP):
                if not self.word_vocab.count(word):
                    word = UNK
            wi = self.word_vocab.index(word)
            tag_idx.append(ti)
            word_idx.append(wi)
        tag_idx = jnp.array(tag_idx)
        word_idx = jnp.array(word_idx)

        embeddings = jnp.concatenate([self.tag_embeddings[tag_idx],
                                      self.word_embeddings[word_idx]], axis=-1)
        lstm_outputs = bilstm(embeddings, self.lstm_params)  # [n+2, 2*lstm_dim]

        D = self.lstm_dim
        spans = [(l, r) for r in range(1, n + 1) for l in range(0, r)]
        span_index = {s: i for i, s in enumerate(spans)}
        lefts = jnp.array([l for l, _ in spans])
        rights = jnp.array([r for _, r in spans])
        fwd = lstm_outputs[rights, :D] - lstm_outputs[lefts, :D]
        bwd = lstm_outputs[lefts + 1, D:] - lstm_outputs[rights + 1, D:]
        enc = jnp.concatenate([fwd, bwd], axis=-1)  # [S, 2*lstm_dim]

        label_scores, split_scores = pallas_span_scores(
            enc, self.fl_w1, self.fl_b1, self.fl_w2, self.fl_b2,
            self.fs_w1, self.fs_b1, self.fs_w2, self.fs_b2)
        jax.block_until_ready((label_scores, split_scores))
        label_np = np.asarray(label_scores)
        split_np = np.asarray(split_scores)

        def helper(left, right):
            ls = label_np[span_index[(left, right)]]
            if right - left < n:
                argmax_label_index = int(ls.argmax())
            else:
                argmax_label_index = int(ls[1:].argmax() + 1)
            label = self.label_vocab.value(argmax_label_index)
            label_loss = float(ls[argmax_label_index])
            if right - left == 1:
                tag, word = sentence[left]
                tree = LeafParseNode(left, tag, word)
                if label:
                    tree = InternalParseNode(label, [tree])
                return [tree], label_loss
            split_candidates = list(range(left + 1, right))
            ss = np.array([split_np[span_index[(left, s)]] +
                           split_np[span_index[(s, right)]]
                           for s in split_candidates])
            argmax_split_index = int(ss.argmax())
            argmax_split = argmax_split_index + (left + 1)
            split_loss = float(ss[argmax_split_index])
            left_trees, left_loss = helper(left, argmax_split)
            right_trees, right_loss = helper(argmax_split, right)
            children = left_trees + right_trees
            if label:
                children = [InternalParseNode(label, children)]
            return children, label_loss + split_loss + left_loss + right_loss

        children, loss = helper(0, n)
        assert len(children) == 1
        return children[0], loss


# ----------------------------- main -------------------------------------------

if __name__ == "__main__":
    key = jax.random.PRNGKey(0)

    tag_vocab = Vocab([START, STOP, UNK, 'DT', 'NN', 'VB', 'JJ'])
    word_vocab = Vocab([START, STOP, UNK, 'the', 'cat', 'sat', 'on', 'mat'],
                       counts={'the': 5, 'cat': 3, 'sat': 2, 'on': 4, 'mat': 1})
    label_vocab = Vocab([(), ('S',), ('NP',), ('VP',), ('PP',)])

    parser = JaxTopDownParser(
        tag_vocab, word_vocab, label_vocab,
        tag_embedding_dim=8, word_embedding_dim=24,
        lstm_layers=2, lstm_dim=32,
        label_hidden_dim=32, split_hidden_dim=32,
        dropout=0.0, key=key)

    sentence = [('DT', 'the'), ('NN', 'cat'), ('VB', 'sat'),
                ('DT', 'the'), ('NN', 'mat'), ('JJ', 'on')]

    tree, loss = parser.forward(sentence)
    _ = tree.linearize()
    _ = float(loss)
    print("KERNEL_OK")
</pallas_src>

<mosaic_0001>
module attributes {stable_mosaic.version = 11 : i64} {
  func.func @_linear_kernel(%arg0: i32, %arg1: memref<8x32xf32, #tpu.memory_space<vmem>>, %arg2: memref<32x256xf32, #tpu.memory_space<vmem>>, %arg3: memref<1x256xf32, #tpu.memory_space<vmem>>, %arg4: memref<8x256xf32, #tpu.memory_space<vmem>>) attributes {dimension_semantics = [#tpu.dimension_semantics<parallel>], iteration_bounds = array<i64: 1>, scalar_prefetch = 0 : i64, scratch_operands = 0 : i64, tpu.core_type = #tpu.core_type<tc>, window_params = [{transform_indices = @transform_0, window_bounds = array<i64: 8, 32>}, {pipeline_mode = #tpu.pipeline_mode<synchronous>, transform_indices = @transform_1, window_bounds = array<i64: 32, 256>}, {pipeline_mode = #tpu.pipeline_mode<synchronous>, transform_indices = @transform_2, window_bounds = array<i64: 1, 256>}, {transform_indices = @transform_3, window_bounds = array<i64: 8, 256>}]} {
    %c0 = arith.constant 0 : index
    %c0_0 = arith.constant 0 : index
    %0 = vector.load %arg1[%c0, %c0_0] : memref<8x32xf32, #tpu.memory_space<vmem>>, vector<8x32xf32>
    %c0_1 = arith.constant 0 : index
    %c0_2 = arith.constant 0 : index
    %1 = vector.load %arg2[%c0_1, %c0_2] : memref<32x256xf32, #tpu.memory_space<vmem>>, vector<32x256xf32>
    %cst = arith.constant dense<0.000000e+00> : vector<8x256xf32>
    %2 = tpu.matmul %0, %1, %cst {dimension_numbers = #tpu.dot_dimension_numbers<[1], [0], [0], [1], [0, 0, 1, 1], [], []>} : vector<8x32xf32>, vector<32x256xf32>, vector<8x256xf32> -> vector<8x256xf32>
    %c0_3 = arith.constant 0 : index
    %c0_4 = arith.constant 0 : index
    %3 = vector.load %arg3[%c0_3, %c0_4] : memref<1x256xf32, #tpu.memory_space<vmem>>, vector<1x256xf32>
    %4 = vector.broadcast %3 : vector<1x256xf32> to vector<8x256xf32>
    %5 = arith.addf %2, %4 : vector<8x256xf32>
    %c0_5 = arith.constant 0 : index
    %c0_6 = arith.constant 0 : index
    %6 = vector.load %arg4[%c0_5, %c0_6] : memref<8x256xf32, #tpu.memory_space<vmem>>, vector<8x256xf32>
    tpu.vector_store %arg4[%c0_5, %c0_6], %5 {strides = array<i32>} : memref<8x256xf32, #tpu.memory_space<vmem>>, vector<8x256xf32>,
    return
  }
  func.func @transform_0(%arg0: i32) -> (i32, i32) {
    %c0_i32 = arith.constant 0 : i32
    %c0_i32_0 = arith.constant 0 : i32
    return %arg0, %c0_i32 : i32, i32
  }
  func.func @transform_1(%arg0: i32) -> (i32, i32) {
    %c0_i32 = arith.constant 0 : i32
    %c0_i32_0 = arith.constant 0 : i32
    %c0_i32_1 = arith.constant 0 : i32
    return %c0_i32, %c0_i32_0 : i32, i32
  }
  func.func @transform_2(%arg0: i32) -> (i32, i32) {
    %c0_i32 = arith.constant 0 : i32
    %c0_i32_0 = arith.constant 0 : i32
    %c0_i32_1 = arith.constant 0 : i32
    return %c0_i32, %c0_i32_0 : i32, i32
  }
  func.func @transform_3(%arg0: i32) -> (i32, i32) {
    %c0_i32 = arith.constant 0 : i32
    %c0_i32_0 = arith.constant 0 : i32
    return %arg0, %c0_i32 : i32, i32
  }
}

</mosaic_0001>

<llo_original>
// kernel: tpu_custom_call.1
$region0: #{tpu_custom_call.1}
  #allocation0 [shape = 'u32[]', space=smem, size = 0x4, offset = 0x4, fixed_abs, tag = 'smem constant byte address 0x4 - core index']
  #allocation1 [shape = 'u32[144,128]{1,0:T(1,128)}', space=vmem, size = 0x12000, scoped, tag = 'internal scratch']
  %s0 = inlined_call_operand.hbm [shape: f32[8,32], index: 0, kind: input, shape index: {}]
  %s1 = inlined_call_operand.hbm [shape: f32[32,256], index: 1, kind: input, shape index: {}]
  %s2 = inlined_call_operand.vmem [shape: f32[1,256], index: 2, kind: input, shape index: {}]
  %s3 = inlined_call_operand.hbm [shape: f32[8,256], index: 3, kind: output, shape index: {}]
  %s4 = sld [smem:[#allocation0]]
  $region30: #{tpu_custom_call.1} parent=0
    _
  %s6 = ssub.s32 1, %s4
  %s7 = scalar_select 0, %s6, %s4
  $region1: #{tpu_custom_call.1} parent=0
    #allocation2 [shape = 'u8[4096]{0}', space=vmem, size = 0x1000, scoped, tag = 'input window, operand 0, single buffered']
    #allocation3 [shape = 's32[1]{0}', space=sflag, size = 0x4, scoped, tag = 'scoped memory for tpu_custom_call.1']
    #allocation4 [shape = 's32[1]{0}', space=sflag, size = 0x4, scoped, tag = 'scoped memory for tpu_custom_call.1']
    #allocation5 [shape = 'u8[32768]{0}', space=vmem, size = 0x8000, scoped, tag = 'input window, operand 1, single buffered']
    #allocation6 [shape = 's32[1]{0}', space=sflag, size = 0x4, scoped, tag = 'scoped memory for tpu_custom_call.1']
    #allocation7 [shape = 'u8[8192]{0}', space=vmem, size = 0x2000, scoped, tag = 'output window, operand 0, single buffered']
    %8 = vsyncpa [#allocation3], 0
    %9 = vsyncpa [#allocation6], 0
    %10 = vsyncpa [#allocation4], 0
    // Predicated region
    $region2: #{tpu_custom_call.1} parent=1 // pred_check
      _
    $region3: #{tpu_custom_call.1} parent=1 // pred_check_branch
      %12 = sbr.rel (0) target = $region5
    $region4: #{tpu_custom_call.1} parent=1 // pred_region
      %s14 = ssub.s32 128, 128
      %15 = vsyncadd [#allocation3], %s14
      %s17 = sshll.u32 [#allocation2], 4
      %s18 = int_to_ptr.vmem [resolvable:$true] %s17
      %20 = dma.hbm_to_vmem [thread:$0]  %s0, 128, %s18, [#allocation3]
    $region5: #{tpu_custom_call.1} parent=1 // pred_fallthru
      _
    // Predicated region
    $region6: #{tpu_custom_call.1} parent=1 // pred_check
      _
    $region7: #{tpu_custom_call.1} parent=1 // pred_check_branch
      %22 = sbr.rel (0) target = $region9
    $region8: #{tpu_custom_call.1} parent=1 // pred_region
      %s24 = ssub.s32 1024, 1024
      %25 = vsyncadd [#allocation6], %s24
      %s26 = sshll.u32 [#allocation5], 4
      %s27 = int_to_ptr.vmem [resolvable:$true] %s26
      %32 = dma.hbm_to_vmem [thread:$0]  %s1, 1024, %s27, [#allocation6], 256, 256, 16
    $region9: #{tpu_custom_call.1} parent=1 // pred_fallthru
      _
    // Predicated region
    $region10: #{tpu_custom_call.1} parent=1 // pred_check
      _
    $region11: #{tpu_custom_call.1} parent=1 // pred_check_branch
      %34 = sbr.rel (0) target = $region13
    $region12: #{tpu_custom_call.1} parent=1 // pred_region
      _
    $region13: #{tpu_custom_call.1} parent=1 // pred_fallthru
      _
    // Predicated region
    $region14: #{tpu_custom_call.1} parent=1 // pred_check
      _
    $region15: #{tpu_custom_call.1} parent=1 // pred_check_branch
      %36 = sbr.rel (0) target = $region17
    $region16: #{tpu_custom_call.1} parent=1 // pred_region
      %37 = dma.done [#allocation3], 128
    $region17: #{tpu_custom_call.1} parent=1 // pred_fallthru
      _
    // Predicated region
    $region18: #{tpu_custom_call.1} parent=1 // pred_check
      _
    $region19: #{tpu_custom_call.1} parent=1 // pred_check_branch
      %39 = sbr.rel (0) target = $region21
    $region20: #{tpu_custom_call.1} parent=1 // pred_region
      %40 = dma.done [#allocation6], 1024
    $region21: #{tpu_custom_call.1} parent=1 // pred_fallthru
      _
    %v41 = vld [vmem:[#allocation2] sm:$0xff]
    %v42 = vld [vmem:[#allocation5] sm:$0xff]
    %v43 = vld [vmem:[#allocation5 + $0x8] sm:$0xff]
    %v44 = vld [vmem:[#allocation5 + $0x10] sm:$0xff]
    %v45 = vld [vmem:[#allocation5 + $0x18] sm:$0xff]
    %v46 = vld [vmem:[#allocation5 + $0x20] sm:$0xff]
    %v47 = vld [vmem:[#allocation5 + $0x28] sm:$0xff]
    %v48 = vld [vmem:[#allocation5 + $0x30] sm:$0xff]
    %v49 = vld [vmem:[#allocation5 + $0x38] sm:$0xff]
    %v50 = vld [vmem:[%s2] sm:$0x3]
    %v52 = vlaneseq
    %v53 = vshrl.u32 %v52, 7
    %v54 = vsub.s32 0, %v53
    %v55 = vrot.slane %v50, %v54
    %v56 = vlaneseq
    %v57 = vshrl.u32 %v56, 7
    %v58 = vsub.s32 1, %v57
    %v59 = vrot.slane %v50, %v58
    %vm62 = vcmask 261120
    %v64 = vsel %vm62, %v41, 0
    %66 = vmatprep.subr.mxu0 %v43
    %67 = vmatpush1.msra.mxu0 %v42
    %68 = vmatprep.subr.mxu0 %v45
    %69 = vmatpush1.msra.mxu0 %v44
    %70 = vmatprep.subr.mxu0 %v47
    %71 = vmatpush1.msra.mxu0 %v46
    %72 = vmatprep.subr.mxu0 %v49
    %73 = vmatpush1.msra.mxu0 %v48
    %74 = vmatprep.subr.mxu0 0.0
    %75 = vmatpush1.msra.mxu0 0.0
    %76 = vmatprep.subr.mxu0 0.0
    %77 = vmatpush1.msra.mxu0 0.0
    %78 = vmatprep.subr.mxu0 0.0
    %79 = vmatpush1.msra.mxu0 0.0
    %80 = vmatprep.subr.mxu0 0.0
    %81 = vmatpush1.msra.mxu0 0.0
    %82 = vmatprep.subr.mxu0 0.0
    %83 = vmatpush1.msra.mxu0 0.0
    %84 = vmatprep.subr.mxu0 0.0
    %85 = vmatpush1.msra.mxu0 0.0
    %86 = vmatprep.subr.mxu0 0.0
    %87 = vmatpush1.msra.mxu0 0.0
    %88 = vmatprep.subr.mxu0 0.0
    %89 = vmatpush1.msra.mxu0 0.0
    %90 = vmatprep.subr.mxu0 0.0
    %91 = vmatpush1.msra.mxu0 0.0
    %92 = vmatprep.subr.mxu0 0.0
    %93 = vmatpush1.msra.mxu0 0.0
    %94 = vmatprep.subr.mxu0 0.0
    %95 = vmatpush1.msra.mxu0 0.0
    %96 = vmatprep.subr.mxu0 0.0
    %97 = vmatpush1.msra.mxu0 0.0
    %98 = vmatprep.subr.mxu0 0.0
    %99 = vmatpush1.msra.mxu0 0.0
    %100 = vmatprep.subr.mxu0 0.0
    %101 = vmatpush1.msra.mxu0 0.0
    %102 = vmatprep.subr.mxu0 0.0
    %103 = vmatpush1.msra.mxu0 0.0
    %104 = vmatprep.subr.mxu0 0.0
    %105 = vmatpush1.msra.mxu0 0.0
    %106 = vmatprep.subr.mxu0 0.0
    %107 = vmatpush1.msra.mxu0 0.0
    %108 = vmatprep.subr.mxu0 0.0
    %109 = vmatpush1.msra.mxu0 0.0
    %110 = vmatprep.subr.mxu0 0.0
    %111 = vmatpush1.msra.mxu0 0.0
    %112 = vmatprep.subr.mxu0 0.0
    %113 = vmatpush1.msra.mxu0 0.0
    %114 = vmatprep.subr.mxu0 0.0
    %115 = vmatpush1.msra.mxu0 0.0
    %116 = vmatprep.subr.mxu0 0.0
    %117 = vmatpush1.msra.mxu0 0.0
    %118 = vmatprep.subr.mxu0 0.0
    %119 = vmatpush1.msra.mxu0 0.0
    %120 = vmatprep.subr.mxu0 0.0
    %121 = vmatpush1.msra.mxu0 0.0
    %122 = vmatprep.subr.mxu0 0.0
    %123 = vmatpush1.msra.mxu0 0.0
    %124 = vmatprep.subr.mxu0 0.0
    %125 = vmatpush1.msra.mxu0 0.0
    %126 = vmatprep.subr.mxu0 0.0
    %127 = vmatpush1.msra.mxu0 0.0
    %128 = vmatprep.subr.mxu0 0.0
    %129 = vmatpush1.msra.mxu0 0.0
    %130 = vmatprep.mubr.f32.mxu0 0.0
    %131 = vmatmul.mubr.f32.gmra.mrb[0].mxu0 %v64
    %v132 = vpop.f32.mrb[0].mxu0
    %v133 = vadd.f32 %v55, %v132
    %v134 = vpop.f32.mrb[0].mxu0
    %v135 = vadd.f32 %v59, %v134
    %136 = vdwg.mxu0
    %137 = vst [vmem:[#allocation7] sm:$0xff] %v133
    %138 = vst [vmem:[#allocation7 + $0x8] sm:$0xff] %v135
    // Predicated region
    $region22: #{tpu_custom_call.1} parent=1 // pred_check
      _
    $region23: #{tpu_custom_call.1} parent=1 // pred_check_branch
      %140 = sbr.rel (0) target = $region25
    $region24: #{tpu_custom_call.1} parent=1 // pred_region
      %s142 = ssub.s32 256, 256
      %143 = vsyncadd [#allocation4], %s142
      %s145 = sshll.u32 [#allocation7], 4
      %s146 = int_to_ptr.vmem [resolvable:$true] %s145
      %148 = dma.vmem_to_hbm [thread:$0]  %s146, 256, %s3, [#allocation4]
    $region25: #{tpu_custom_call.1} parent=1 // pred_fallthru
      _
    // Predicated region
    $region26: #{tpu_custom_call.1} parent=1 // pred_check
      _
    $region27: #{tpu_custom_call.1} parent=1 // pred_check_branch
      %150 = sbr.rel (0) target = $region29
    $region28: #{tpu_custom_call.1} parent=1 // pred_region
      %151 = dma.done [#allocation4], 256
    $region29: #{tpu_custom_call.1} parent=1 // pred_fallthru
      _
    %152 = vsyncpa [#allocation3], 1
    %153 = vsyncpa [#allocation6], 1
    %154 = vsyncpa [#allocation4], 1

</llo_original>
